<compile_context>
chip_gen: v5e
topology: v5e:2x2
jax: 0.10.0
libtpu: 0.0.40
codegen_flags: <defaults>
</compile_context>

<pallas_src>
import functools

import jax
import jax.numpy as jnp
from jax.experimental import pallas as pl
from jax.experimental.pallas import tpu as pltpu

LANE = 128   # TPU lane width


def _round_up(x, m):
    return (x + m - 1) // m * m


def _pick_row_tiling(B, max_row_tile=128):
    """Choose (row_tile, padded_batch).

    * row_tile is a multiple of 16 (bf16 packs 16 sublanes per vreg),
    * the row axis of the grid always has >= 2 steps so the "parallel"
      annotation can shard across both TensorCores on v7x,
    * row_tile is as close to max_row_tile (MXU M rows) as B allows.
    """
    rt = min(max_row_tile, max(16, _round_up((B + 1) // 2, 16)))
    rt = max(16, (rt // 16) * 16)
    b_pad = max(_round_up(B, rt), 2 * rt)
    return rt, b_pad


# ----------------------------------------------------------------------------
# Fused Pallas kernel: K-tiled encoder matmul (+loss routing) -> full MLP
# ----------------------------------------------------------------------------
def _make_fused_kernel(n_layers):
    def kernel(*refs):
        patches_ref = refs[0]                       # [rt, tk]      bf16
        w_big_ref = refs[1]                         # [tk, n0_pad]  bf16
        w_refs = refs[2:2 + n_layers]               # per-layer padded weights
        b_refs = refs[2 + n_layers:2 + 2 * n_layers]
        out_ref = refs[2 + 2 * n_layers]            # [rt, d_last_pad] f32
        acc_ref = refs[2 + 2 * n_layers + 1]        # [rt, n0_pad]  f32 scratch

        k = pl.program_id(1)
        nk = pl.num_programs(1)

        @pl.when(k == 0)
        def _():
            acc_ref[...] = jnp.zeros_like(acc_ref)

        # K-tile of the folded encoder matmul (patchify conv + mode() +
        # NCHW flatten + tolerated_loss routing all live inside w_big).
        acc_ref[...] += jnp.dot(patches_ref[...], w_big_ref[...],
                                preferred_element_type=jnp.float32)

        @pl.when(k == nk - 1)
        def _():
            # MLP: (Linear -> ReLU) * (n_layers - 1), then final Linear.
            # Encoder bias is pre-folded into the first MLP bias.
            x = acc_ref[...]
            for i in range(n_layers):
                x = jnp.dot(x.astype(jnp.bfloat16), w_refs[i][...],
                            preferred_element_type=jnp.float32)
                x = x + b_refs[i][...]
                if i < n_layers - 1:
                    x = jnp.maximum(x, 0.0)
            out_ref[...] = x        # unmasked lane-dense store; column 0 valid
    return kernel


# ----------------------------------------------------------------------------
# Wrapper: patch extraction glue + single pallas_call
# ----------------------------------------------------------------------------
def compression_rate_predictor(images, tolerated_loss, kernel_params, *,
                               patch=8, row_tile=128, k_tile=512):
    """Full forward pass mirroring CompressionRatePredictor.forward."""
    w_big, w_mlp, b_mlp = kernel_params
    n_layers = len(w_mlp)
    assert len(b_mlp) == n_layers

    B, C, H, W = images.shape
    nH, nW = H // patch, W // patch
    P = nH * nW
    ck = C * patch * patch
    ck_pad = _round_up(ck + 1, LANE)          # +1 spare lane carries the loss
    assert w_big.shape[0] == P * ck_pad

    n0_pad = int(w_big.shape[1])
    d_last_pad = int(w_mlp[-1].shape[1])

    rt, B_pad = _pick_row_tiling(B, row_tile)

    K = P * ck_pad
    assert k_tile % LANE == 0
    tk = min(k_tile, K)
    K_pad = _round_up(K, tk)
    n_k = K_pad // tk

    # --- XLA glue: non-overlapping stride-`patch` patch extraction ----------
    x = images.reshape(B, C, nH, patch, nW, patch)
    x = x.transpose(0, 2, 4, 1, 3, 5).reshape(B, P, ck)      # [B, P, ck]
    x = jnp.pad(x, ((0, 0), (0, 0), (0, ck_pad - ck)))       # lane-align patch
    # tolerated_loss rides in patch 0's first spare lane (column ck);
    # w_big[ck, input_dim] == 1.0 routes it through the same MXU dot.
    x = x.at[:, 0, ck].set(tolerated_loss[:, 0].astype(x.dtype))
    patches = x.reshape(B, P * ck_pad)
    patches = jnp.pad(patches,
                      ((0, B_pad - B), (0, K_pad - K))).astype(jnp.bfloat16)
    if K_pad > K:                                             # keep K tileable
        w_big = jnp.pad(w_big, ((0, K_pad - K), (0, 0)))

    kernel = _make_fused_kernel(n_layers)
    in_specs = (
        [pl.BlockSpec((rt, tk), lambda i, k: (i, k)),         # patches, K-tiled
         pl.BlockSpec((tk, n0_pad), lambda i, k: (k, 0))]     # w_big,   K-tiled
        + [pl.BlockSpec(tuple(w.shape), lambda i, k: (0, 0)) for w in w_mlp]
        + [pl.BlockSpec(tuple(b.shape), lambda i, k: (0, 0)) for b in b_mlp]
    )

    out = pl.pallas_call(
        kernel,
        out_shape=jax.ShapeDtypeStruct((B_pad, d_last_pad), jnp.float32),
        grid=(B_pad // rt, n_k),
        in_specs=in_specs,
        out_specs=pl.BlockSpec((rt, d_last_pad), lambda i, k: (i, 0)),
        scratch_shapes=[pltpu.VMEM((rt, n0_pad), jnp.float32)],
        compiler_params=pltpu.CompilerParams(
            dimension_semantics=("parallel", "arbitrary"),
            # let XLA fuse the patch-extraction glue into the kernel input
            allow_input_fusion=[True] + [False] * (1 + 2 * n_layers),
            vmem_limit_bytes=32 * 1024 * 1024,
        ),
    )(patches, w_big, *w_mlp, *b_mlp)

    return out[:B, :1]                                        # [B, 1]


# ----------------------------------------------------------------------------
# Parameter init (natural shapes) + repack into the fused kernel layout
# ----------------------------------------------------------------------------
def init_params(key, *, img_ch, patch, latent_ch, input_dim, loss_dim, hidden_dims):
    n_mlp = len(hidden_dims) + 1
    keys = jax.random.split(key, 2 + 2 * n_mlp)
    ki = iter(keys)
    ck = img_ch * patch * patch
    # Synthetic stand-in for the pretrained AutoencoderKL encoder: one
    # stride-8/kernel-8 conv to 2*latent_ch moment channels (matmul form).
    w_enc = jax.random.normal(next(ki), (ck, 2 * latent_ch), jnp.float32) * 0.05
    b_enc = jax.random.normal(next(ki), (2 * latent_ch,), jnp.float32) * 0.01
    enc_params = (w_enc, b_enc)

    mlp_params = []
    d_in = input_dim + loss_dim
    for d_out in list(hidden_dims) + [1]:
        w = jax.random.normal(next(ki), (d_in, d_out), jnp.float32) / (d_in ** 0.5)
        b = jax.random.normal(next(ki), (d_out,), jnp.float32) * 0.01
        mlp_params.append((w, b))
        d_in = d_out
    return enc_params, mlp_params


def prepare_kernel_params(enc_params, mlp_params, *, img_ch, patch, latent_ch,
                          nH, nW):
    """Repack natural-shape params into the padded, fused kernel layout.

    Layout plumbing only (done once, off the hot path):
      * patchify conv + mode() slice + NCHW .view(B,-1) reorder folded into one
        block-structured weight  w_big[p*ck_pad + k, c*P + p] = w_enc[k, c];
      * w_big[ck, input_dim] = 1.0 routes the tolerated_loss lane;
      * encoder bias folded into the first MLP bias;
      * each MLP layer padded to its OWN (round_up(d_in,128), round_up(d_out,128)).
    Zero padding keeps padded lanes exactly 0 through every ReLU.
    """
    w_enc, b_enc = enc_params
    L, P = latent_ch, nH * nW
    ck = img_ch * patch * patch
    ck_pad = _round_up(ck + 1, LANE)          # +1 spare lane for tolerated_loss
    input_dim = L * P
    n0 = input_dim + 1                        # + loss_dim
    n0_pad = _round_up(n0, LANE)
    assert mlp_params[0][0].shape[0] == n0

    # mode() of the diagonal Gaussian == mean == first latent_ch channels.
    w_mode = w_enc[:, :L]
    b_mode = b_enc[:L]

    w_enc_pad = jnp.zeros((ck_pad, L), jnp.float32).at[:ck, :].set(w_mode)
    w_big = jnp.einsum("kc,pq->pkcq", w_enc_pad, jnp.eye(P, dtype=jnp.float32))
    w_big = w_big.reshape(P * ck_pad, input_dim)
    w_big = jnp.zeros((P * ck_pad, n0_pad), jnp.float32).at[:, :input_dim].set(w_big)
    w_big = w_big.at[ck, input_dim].set(1.0)          # loss routing column

    # Fold encoder bias into the first MLP bias:
    #   concat([flat + b_rep, loss]) @ w0 + b0
    #     == concat([flat, loss]) @ w0 + (b0 + b_rep @ w0[:input_dim]).
    b_enc_flat = jnp.repeat(b_mode, P)                # channel-major flatten
    w0, b0 = mlp_params[0]
    b0_eff = b0 + b_enc_flat @ w0[:input_dim, :]
    eff_mlp = [(w0, b0_eff)] + [(w, b) for (w, b) in mlp_params[1:]]

    w_list, b_list = [], []
    for (w, b) in eff_mlp:
        d_in, d_out = w.shape
        di, do = _round_up(d_in, LANE), _round_up(d_out, LANE)
        w_list.append(jnp.zeros((di, do), jnp.float32)
                      .at[:d_in, :d_out].set(w).astype(jnp.bfloat16))
        b_list.append(jnp.zeros((1, do), jnp.float32).at[0, :d_out].set(b))

    return (w_big.astype(jnp.bfloat16),       # [P*ck_pad, n0_pad] bf16
            tuple(w_list),                    # per-layer padded bf16 weights
            tuple(b_list))                    # per-layer padded f32 biases


# ----------------------------------------------------------------------------
# Pure-JAX reference (mirrors the module's forward and the kernel's bf16 math)
# ----------------------------------------------------------------------------
def reference_forward(images, tolerated_loss, enc_params, mlp_params, *,
                      patch, latent_ch):
    w_enc, b_enc = enc_params
    B, C, H, W = images.shape
    nH, nW = H // patch, W // patch
    ck = C * patch * patch
    bf = lambda a: a.astype(jnp.bfloat16).astype(jnp.float32)

    x = images.reshape(B, C, nH, patch, nW, patch).transpose(0, 2, 4, 1, 3, 5)
    patches = x.reshape(B * nH * nW, ck)
    latents = bf(patches) @ bf(w_enc[:, :latent_ch]) + b_enc[:latent_ch]
    # NCHW latent .view(B, -1): channel-major flatten.
    flat = latents.reshape(B, nH, nW, latent_ch).transpose(0, 3, 1, 2).reshape(B, -1)
    h = jnp.concatenate([flat, tolerated_loss.astype(jnp.float32)], axis=1)
    for i, (w, b) in enumerate(mlp_params):
        h = bf(h) @ bf(w) + b
        if i < len(mlp_params) - 1:
            h = jnp.maximum(h, 0.0)
    return h


# ----------------------------------------------------------------------------
# Main
# ----------------------------------------------------------------------------
if __name__ == "__main__":
    B, C, H, W = 2, 3, 16, 16
    PATCH = 8                    # VAE downsample factor 8
    LATENT_CH = 4                # AutoencoderKL latent channels
    LOSS_DIM = 1
    HIDDEN_DIMS = [32, 16]       # small stand-in for [512, 256, 128, 64]
    nH, nW = H // PATCH, W // PATCH
    INPUT_DIM = LATENT_CH * nH * nW

    key = jax.random.PRNGKey(0)
    k_img, k_loss, k_par = jax.random.split(key, 3)
    images = jax.random.normal(k_img, (B, C, H, W), jnp.float32)
    tolerated_loss = jax.random.uniform(k_loss, (B, LOSS_DIM), jnp.float32)

    enc_params, mlp_params = init_params(
        k_par, img_ch=C, patch=PATCH, latent_ch=LATENT_CH,
        input_dim=INPUT_DIM, loss_dim=LOSS_DIM, hidden_dims=HIDDEN_DIMS)
    kernel_params = prepare_kernel_params(
        enc_params, mlp_params, img_ch=C, patch=PATCH,
        latent_ch=LATENT_CH, nH=nH, nW=nW)

    fwd = jax.jit(functools.partial(compression_rate_predictor, patch=PATCH))
    out = jax.block_until_ready(fwd(images, tolerated_loss, kernel_params))
    assert out.shape == (B, 1), out.shape

    ref = reference_forward(images, tolerated_loss, enc_params, mlp_params,
                            patch=PATCH, latent_ch=LATENT_CH)
    assert jnp.allclose(out, ref, rtol=5e-2, atol=5e-2), (out, ref)
    print("KERNEL_OK")
</pallas_src>

<mosaic_0001>
module attributes {stable_mosaic.version = 11 : i64} {
  func.func @kernel(%arg0: i32, %arg1: i32, %arg2: memref<16x512xbf16, #tpu.memory_space<vmem>>, %arg3: memref<512x128xbf16, #tpu.memory_space<vmem>>, %arg4: memref<128x128xbf16, #tpu.memory_space<vmem>>, %arg5: memref<128x128xbf16, #tpu.memory_space<vmem>>, %arg6: memref<128x128xbf16, #tpu.memory_space<vmem>>, %arg7: memref<1x128xf32, #tpu.memory_space<vmem>>, %arg8: memref<1x128xf32, #tpu.memory_space<vmem>>, %arg9: memref<1x128xf32, #tpu.memory_space<vmem>>, %arg10: memref<16x128xf32, #tpu.memory_space<vmem>>, %arg11: memref<16x128xf32, #tpu.memory_space<vmem>>) attributes {dimension_semantics = [#tpu.dimension_semantics<parallel>, #tpu.dimension_semantics<arbitrary>], iteration_bounds = array<i64: 2, 2>, scalar_prefetch = 0 : i64, scratch_operands = 1 : i64, tpu.core_type = #tpu.core_type<tc>, window_params = [{transform_indices = @transform_0, window_bounds = array<i64: 16, 512>}, {transform_indices = @transform_1, window_bounds = array<i64: 512, 128>}, {pipeline_mode = #tpu.pipeline_mode<synchronous>, transform_indices = @transform_2, window_bounds = array<i64: 128, 128>}, {pipeline_mode = #tpu.pipeline_mode<synchronous>, transform_indices = @transform_3, window_bounds = array<i64: 128, 128>}, {pipeline_mode = #tpu.pipeline_mode<synchronous>, transform_indices = @transform_4, window_bounds = array<i64: 128, 128>}, {pipeline_mode = #tpu.pipeline_mode<synchronous>, transform_indices = @transform_5, window_bounds = array<i64: 1, 128>}, {pipeline_mode = #tpu.pipeline_mode<synchronous>, transform_indices = @transform_6, window_bounds = array<i64: 1, 128>}, {pipeline_mode = #tpu.pipeline_mode<synchronous>, transform_indices = @transform_7, window_bounds = array<i64: 1, 128>}, {transform_indices = @transform_8, window_bounds = array<i64: 16, 128>}]} {
    %c0_i32 = arith.constant 0 : i32
    %0 = arith.cmpi eq, %arg1, %c0_i32 : i32
    %1 = arith.extui %0 : i1 to i32
    %c0_i32_0 = arith.constant 0 : i32
    %2 = arith.cmpi ne, %1, %c0_i32_0 : i32
    scf.if %2 {
      %cst_9 = arith.constant 0.000000e+00 : f32
      %12 = vector.broadcast %cst_9 : f32 to vector<16x128xf32>
      %c0_10 = arith.constant 0 : index
      %c0_11 = arith.constant 0 : index
      %13 = vector.load %arg11[%c0_10, %c0_11] : memref<16x128xf32, #tpu.memory_space<vmem>>, vector<16x128xf32>
      tpu.vector_store %arg11[%c0_10, %c0_11], %12 {strides = array<i32>} : memref<16x128xf32, #tpu.memory_space<vmem>>, vector<16x128xf32>,
    } else {
    }
    %c0 = arith.constant 0 : index
    %c0_1 = arith.constant 0 : index
    %3 = vector.load %arg11[%c0, %c0_1] : memref<16x128xf32, #tpu.memory_space<vmem>>, vector<16x128xf32>
    %c0_2 = arith.constant 0 : index
    %c0_3 = arith.constant 0 : index
    %4 = vector.load %arg2[%c0_2, %c0_3] : memref<16x512xbf16, #tpu.memory_space<vmem>>, vector<16x512xbf16>
    %c0_4 = arith.constant 0 : index
    %c0_5 = arith.constant 0 : index
    %5 = vector.load %arg3[%c0_4, %c0_5] : memref<512x128xbf16, #tpu.memory_space<vmem>>, vector<512x128xbf16>
    %cst = arith.constant dense<0.000000e+00> : vector<16x128xf32>
    %6 = tpu.matmul %4, %5, %cst {dimension_numbers = #tpu.dot_dimension_numbers<[1], [0], [0], [1], [0, 0, 1, 1], [], []>} : vector<16x512xbf16>, vector<512x128xbf16>, vector<16x128xf32> -> vector<16x128xf32>
    %7 = arith.addf %3, %6 : vector<16x128xf32>
    %c0_6 = arith.constant 0 : index
    %c0_7 = arith.constant 0 : index
    %8 = vector.load %arg11[%c0_6, %c0_7] : memref<16x128xf32, #tpu.memory_space<vmem>>, vector<16x128xf32>
    tpu.vector_store %arg11[%c0_6, %c0_7], %7 {strides = array<i32>} : memref<16x128xf32, #tpu.memory_space<vmem>>, vector<16x128xf32>,
    %c1_i32 = arith.constant 1 : i32
    %9 = arith.cmpi eq, %arg1, %c1_i32 : i32
    %10 = arith.extui %9 : i1 to i32
    %c0_i32_8 = arith.constant 0 : i32
    %11 = arith.cmpi ne, %10, %c0_i32_8 : i32
    scf.if %11 {
      %c0_9 = arith.constant 0 : index
      %c0_10 = arith.constant 0 : index
      %12 = vector.load %arg11[%c0_9, %c0_10] : memref<16x128xf32, #tpu.memory_space<vmem>>, vector<16x128xf32>
      %13 = arith.truncf %12 : vector<16x128xf32> to vector<16x128xbf16>
      %c0_11 = arith.constant 0 : index
      %c0_12 = arith.constant 0 : index
      %14 = vector.load %arg4[%c0_11, %c0_12] : memref<128x128xbf16, #tpu.memory_space<vmem>>, vector<128x128xbf16>
      %cst_13 = arith.constant dense<0.000000e+00> : vector<16x128xf32>
      %15 = tpu.matmul %13, %14, %cst_13 {dimension_numbers = #tpu.dot_dimension_numbers<[1], [0], [0], [1], [0, 0, 1, 1], [], []>} : vector<16x128xbf16>, vector<128x128xbf16>, vector<16x128xf32> -> vector<16x128xf32>
      %c0_14 = arith.constant 0 : index
      %c0_15 = arith.constant 0 : index
      %16 = vector.load %arg7[%c0_14, %c0_15] : memref<1x128xf32, #tpu.memory_space<vmem>>, vector<1x128xf32>
      %17 = vector.broadcast %16 : vector<1x128xf32> to vector<16x128xf32>
      %18 = arith.addf %15, %17 : vector<16x128xf32>
      %cst_16 = arith.constant 0.000000e+00 : f32
      %19 = vector.broadcast %cst_16 : f32 to vector<16x128xf32>
      %20 = arith.maximumf %18, %19 : vector<16x128xf32>
      %21 = arith.truncf %20 : vector<16x128xf32> to vector<16x128xbf16>
      %c0_17 = arith.constant 0 : index
      %c0_18 = arith.constant 0 : index
      %22 = vector.load %arg5[%c0_17, %c0_18] : memref<128x128xbf16, #tpu.memory_space<vmem>>, vector<128x128xbf16>
      %cst_19 = arith.constant dense<0.000000e+00> : vector<16x128xf32>
      %23 = tpu.matmul %21, %22, %cst_19 {dimension_numbers = #tpu.dot_dimension_numbers<[1], [0], [0], [1], [0, 0, 1, 1], [], []>} : vector<16x128xbf16>, vector<128x128xbf16>, vector<16x128xf32> -> vector<16x128xf32>
      %c0_20 = arith.constant 0 : index
      %c0_21 = arith.constant 0 : index
      %24 = vector.load %arg8[%c0_20, %c0_21] : memref<1x128xf32, #tpu.memory_space<vmem>>, vector<1x128xf32>
      %25 = vector.broadcast %24 : vector<1x128xf32> to vector<16x128xf32>
      %26 = arith.addf %23, %25 : vector<16x128xf32>
      %cst_22 = arith.constant 0.000000e+00 : f32
      %27 = vector.broadcast %cst_22 : f32 to vector<16x128xf32>
      %28 = arith.maximumf %26, %27 : vector<16x128xf32>
      %29 = arith.truncf %28 : vector<16x128xf32> to vector<16x128xbf16>
      %c0_23 = arith.constant 0 : index
      %c0_24 = arith.constant 0 : index
      %30 = vector.load %arg6[%c0_23, %c0_24] : memref<128x128xbf16, #tpu.memory_space<vmem>>, vector<128x128xbf16>
      %cst_25 = arith.constant dense<0.000000e+00> : vector<16x128xf32>
      %31 = tpu.matmul %29, %30, %cst_25 {dimension_numbers = #tpu.dot_dimension_numbers<[1], [0], [0], [1], [0, 0, 1, 1], [], []>} : vector<16x128xbf16>, vector<128x128xbf16>, vector<16x128xf32> -> vector<16x128xf32>
      %c0_26 = arith.constant 0 : index
      %c0_27 = arith.constant 0 : index
      %32 = vector.load %arg9[%c0_26, %c0_27] : memref<1x128xf32, #tpu.memory_space<vmem>>, vector<1x128xf32>
      %33 = vector.broadcast %32 : vector<1x128xf32> to vector<16x128xf32>
      %34 = arith.addf %31, %33 : vector<16x128xf32>
      %c0_28 = arith.constant 0 : index
      %c0_29 = arith.constant 0 : index
      %35 = vector.load %arg10[%c0_28, %c0_29] : memref<16x128xf32, #tpu.memory_space<vmem>>, vector<16x128xf32>
      tpu.vector_store %arg10[%c0_28, %c0_29], %34 {strides = array<i32>} : memref<16x128xf32, #tpu.memory_space<vmem>>, vector<16x128xf32>,
    } else {
    }
    return
  }
  func.func @transform_0(%arg0: i32, %arg1: i32) -> (i32, i32) {
    %c0_i32 = arith.constant 0 : i32
    return %arg0, %arg1 : i32, i32
  }
  func.func @transform_1(%arg0: i32, %arg1: i32) -> (i32, i32) {
    %c0_i32 = arith.constant 0 : i32
    %c0_i32_0 = arith.constant 0 : i32
    return %arg1, %c0_i32 : i32, i32
  }
  func.func @transform_2(%arg0: i32, %arg1: i32) -> (i32, i32) {
    %c0_i32 = arith.constant 0 : i32
    %c0_i32_0 = arith.constant 0 : i32
    %c0_i32_1 = arith.constant 0 : i32
    return %c0_i32, %c0_i32_0 : i32, i32
  }
  func.func @transform_3(%arg0: i32, %arg1: i32) -> (i32, i32) {
    %c0_i32 = arith.constant 0 : i32
    %c0_i32_0 = arith.constant 0 : i32
    %c0_i32_1 = arith.constant 0 : i32
    return %c0_i32, %c0_i32_0 : i32, i32
  }
  func.func @transform_4(%arg0: i32, %arg1: i32) -> (i32, i32) {
    %c0_i32 = arith.constant 0 : i32
    %c0_i32_0 = arith.constant 0 : i32
    %c0_i32_1 = arith.constant 0 : i32
    return %c0_i32, %c0_i32_0 : i32, i32
  }
  func.func @transform_5(%arg0: i32, %arg1: i32) -> (i32, i32) {
    %c0_i32 = arith.constant 0 : i32
    %c0_i32_0 = arith.constant 0 : i32
    %c0_i32_1 = arith.constant 0 : i32
    return %c0_i32, %c0_i32_0 : i32, i32
  }
  func.func @transform_6(%arg0: i32, %arg1: i32) -> (i32, i32) {
    %c0_i32 = arith.constant 0 : i32
    %c0_i32_0 = arith.constant 0 : i32
    %c0_i32_1 = arith.constant 0 : i32
    return %c0_i32, %c0_i32_0 : i32, i32
  }
  func.func @transform_7(%arg0: i32, %arg1: i32) -> (i32, i32) {
    %c0_i32 = arith.constant 0 : i32
    %c0_i32_0 = arith.constant 0 : i32
    %c0_i32_1 = arith.constant 0 : i32
    return %c0_i32, %c0_i32_0 : i32, i32
  }
  func.func @transform_8(%arg0: i32, %arg1: i32) -> (i32, i32) {
    %c0_i32 = arith.constant 0 : i32
    %c0_i32_0 = arith.constant 0 : i32
    return %arg0, %c0_i32 : i32, i32
  }
}

</mosaic_0001>

<llo_original>
// kernel: compression_rate_predictor.2
$region0: #{compression_rate_predictor.2}
  #allocation0 [shape = 'u32[]', space=smem, size = 0x4, offset = 0x4, fixed_abs, tag = 'smem constant byte address 0x4 - core index']
  #allocation1 [shape = 'u32[72,128]{1,0:T(1,128)}', space=vmem, size = 0x9000, scoped, tag = 'internal scratch']
  #allocation2 [shape = 'f32[16,128]{1,0:T(8,128)}', space=vmem, size = 0x2000, scoped, tag = 'scratch operand']
  #allocation3 [shape = 'u32[2048]{0}', space=vmem, size = 0x2000, scoped, tag = 'scoped memory for compression_rate_predictor.2']
  #allocation4 [shape = 'u32[2048]{0}', space=vmem, size = 0x2000, scoped, tag = 'scoped memory for compression_rate_predictor.2']
  #allocation5 [shape = 'u32[2048]{0}', space=vmem, size = 0x2000, scoped, tag = 'scoped memory for compression_rate_predictor.2']
  #allocation6 [shape = 'u32[2048]{0}', space=vmem, size = 0x2000, scoped, tag = 'scoped memory for compression_rate_predictor.2']
  #allocation7 [shape = 'u32[2048]{0}', space=vmem, size = 0x2000, scoped, tag = 'scoped memory for compression_rate_predictor.2']
  %s0 = inlined_call_operand.vmem [shape: bf16[1024,128], index: 0, kind: input, shape index: {}]
  %s1 = inlined_call_operand.hbm [shape: bf16[128,128], index: 1, kind: input, shape index: {}]
  %s2 = inlined_call_operand.hbm [shape: bf16[128,128], index: 2, kind: input, shape index: {}]
  %s3 = inlined_call_operand.hbm [shape: bf16[128,128], index: 3, kind: input, shape index: {}]
  %s4 = inlined_call_operand.vmem [shape: f32[1,128], index: 4, kind: input, shape index: {}]
  %s5 = inlined_call_operand.vmem [shape: f32[1,128], index: 5, kind: input, shape index: {}]
  %s6 = inlined_call_operand.vmem [shape: f32[1,128], index: 6, kind: input, shape index: {}]
  %s7 = inlined_call_operand.vmem [shape: bf16[2,1024], index: 7, kind: input, shape index: {}]
  %s8 = inlined_call_operand.<no memory space> [shape: bf16[], index: 8, kind: input, shape index: {}]
  %s9 = inlined_call_operand.vmem [shape: f32[32,128], index: 9, kind: output, shape index: {}]
  %s10 = sld [smem:[#allocation0]]
  $region85: #{compression_rate_predictor.2} parent=0
    _
  %s12 = ssub.s32 1, %s10
  %s13 = scalar_select 0, %s12, %s10
  %v14 = vstv %s8
  %v15 = vunpack.i.l.bf16 %v14
  %v17 = vunpack.i.h.bf16 %v14
  $region1: #{compression_rate_predictor.2} parent=0
    #allocation8 [shape = 'u8[32768]{0}', space=vmem, size = 0x8000, scoped, tag = 'input window, operand 2, single buffered']
    #allocation9 [shape = 's32[2]{0}', space=sflag, size = 0x8, scoped, tag = 'scoped memory for compression_rate_predictor.2']
    #allocation10 [shape = 'u8[32768]{0}', space=vmem, size = 0x8000, scoped, tag = 'input window, operand 3, single buffered']
    #allocation11 [shape = 's32[1]{0}', space=sflag, size = 0x4, scoped, tag = 'scoped memory for compression_rate_predictor.2']
    #allocation12 [shape = 'u8[32768]{0}', space=vmem, size = 0x8000, scoped, tag = 'input window, operand 4, single buffered']
    %19 = vsyncpa [#allocation9], 0
    %20 = vsyncpa [#allocation11], 0
    loop: start=0, step=1, limit=6
    $region2: #{compression_rate_predictor.2} parent=1 // loop_pre_header
      _
    $region3: #{compression_rate_predictor.2} parent=1 // loop_header
      %s22 = sphi 0, %s26
      %p23 = scmp.ge.s32.totalorder %s22, 6
      %s29 = sphi 0, %s41
      %s30 = sphi 0, %s37
      %s31 = sphi 0, %s29
      %s32 = sphi 0, %s30
      %s33 = sphi 0, %s31
      %s34 = sphi 0, %s32
      %s46 = sphi 0, %s48
      %s49 = sphi 0, %s46
      %s50 = sphi 0, %s49
      %s66 = sphi 0, %s50
      %s72 = sphi 0, %s74
      %s75 = sphi 0, %s72
      %s76 = sphi 0, %s75
      %s92 = sphi 0, %s76
      %s96 = sphi 0, %s96
      %s98 = sphi 0, %s96
      %s99 = sphi 0, %s98
      %s113 = sphi 0, %s99
      %s117 = sphi 0, %s117
      %s119 = sphi 0, %s117
      %s120 = sphi 0, %s119
      %s134 = sphi 0, %s120
      %s138 = sphi 0, %s138
      %s140 = sphi 0, %s138
      %s141 = sphi 0, %s140
      %s155 = sphi 0, %s141
      %s159 = sphi 0, %s159
      %s161 = sphi 0, %s159
      %s162 = sphi 0, %s161
      %s176 = sphi 0, %s162
      %s180 = sphi 0, %s180
      %s182 = sphi 0, %s180
      %s183 = sphi 0, %s182
      %s197 = sphi 0, %s183
      %s201 = sphi 0, %s201
      %s203 = sphi 0, %s201
      %s204 = sphi 0, %s203
      %s218 = sphi 0, %s204
      %s224 = sphi 0, %s226
      %s227 = sphi 0, %s224
      %s228 = sphi 0, %s227
      %s244 = sphi 0, %s228
    $region4: #{compression_rate_predictor.2} parent=1 // loop_header_branch
      %25 = sbr.rel (%p23) target = $region8
    $region5: #{compression_rate_predictor.2} parent=1 // loop_body
      %s27 = ssub.s32 %s22, 1
      %s28 = ssub.s32 %s22, 2
      %s35 = sadd.s32 1, %s30
      %p36 = scmp.ge.s32.totalorder %s35, 2
      %s37 = scalar_select %p36, 0, %s35
      %s38 = sadd.s32 1, %s29
      %s39 = scalar_select %p36, %s38, %s29
      %p40 = scmp.ge.s32.totalorder %s39, 2
      %s41 = scalar_select %p40, 0, %s39
      %s42 = ssub.s32 %s29, %s41
      %s43 = ssub.s32 %s30, %s37
      %s44 = sor.u32 %s42, %s43
      %p45 = scmp.eq.s32.totalorder %s44, 0
      %s47 = sadd.s32 %s46, 1
      %s48 = scalar_select %p45, %s46, %s47
      %p51 = pneg %p45
      %p52 = scmp.eq.s32.totalorder %s22, 3
      %p53 = por %p51, %p52
      %p54 = scmp.ne.s32.totalorder %s46, %s49
      %p55 = scmp.eq.s32.totalorder %s22, 0
      %p56 = por %p54, %p55
      %p57 = scmp.ne.s32.totalorder %s46, %s49
      %p58 = scmp.eq.s32.totalorder %s27, 3
      %p59 = por %p57, %p58
      %p60 = scmp.ne.s32.totalorder %s49, %s50
      %p61 = scmp.eq.s32.totalorder %s27, 0
      %p62 = por %p60, %p61
      %p63 = scmp.ne.s32.totalorder %s49, %s50
      %p64 = scmp.eq.s32.totalorder %s28, 3
      %p65 = por %p63, %p64
      %p67 = scmp.ne.s32.totalorder %s50, %s66
      %p68 = scmp.eq.s32.totalorder %s28, 0
      %p69 = por %p67, %p68
      %s70 = ssub.s32 %s30, %s37
      %p71 = scmp.eq.s32.totalorder %s70, 0
      %s73 = sadd.s32 %s72, 1
      %s74 = scalar_select %p71, %s72, %s73
      %p77 = pneg %p71
      %p78 = scmp.eq.s32.totalorder %s22, 3
      %p79 = por %p77, %p78
      %p80 = scmp.ne.s32.totalorder %s72, %s75
      %p81 = scmp.eq.s32.totalorder %s22, 0
      %p82 = por %p80, %p81
      %p83 = scmp.ne.s32.totalorder %s72, %s75
      %p84 = scmp.eq.s32.totalorder %s27, 3
      %p85 = por %p83, %p84
      %p86 = scmp.ne.s32.totalorder %s75, %s76
      %p87 = scmp.eq.s32.totalorder %s27, 0
      %p88 = por %p86, %p87
      %p89 = scmp.ne.s32.totalorder %s75, %s76
      %p90 = scmp.eq.s32.totalorder %s28, 3
      %p91 = por %p89, %p90
      %p93 = scmp.ne.s32.totalorder %s76, %s92
      %p94 = scmp.eq.s32.totalorder %s28, 0
      %p95 = por %p93, %p94
      %s97 = sadd.s32 %s96, 1
      %p100 = scmp.eq.s32.totalorder %s22, 3
      %p101 = scmp.ne.s32.totalorder %s96, %s98
      %p102 = scmp.eq.s32.totalorder %s22, 0
      %p103 = por %p101, %p102
      %p104 = scmp.ne.s32.totalorder %s96, %s98
      %p105 = scmp.eq.s32.totalorder %s27, 3
      %p106 = por %p104, %p105
      %p107 = scmp.ne.s32.totalorder %s98, %s99
      %p108 = scmp.eq.s32.totalorder %s27, 0
      %p109 = por %p107, %p108
      %p110 = scmp.ne.s32.totalorder %s98, %s99
      %p111 = scmp.eq.s32.totalorder %s28, 3
      %p112 = por %p110, %p111
      %p114 = scmp.ne.s32.totalorder %s99, %s113
      %p115 = scmp.eq.s32.totalorder %s28, 0
      %p116 = por %p114, %p115
      %s118 = sadd.s32 %s117, 1
      %p121 = scmp.eq.s32.totalorder %s22, 3
      %p122 = scmp.ne.s32.totalorder %s117, %s119
      %p123 = scmp.eq.s32.totalorder %s22, 0
      %p124 = por %p122, %p123
      %p125 = scmp.ne.s32.totalorder %s117, %s119
      %p126 = scmp.eq.s32.totalorder %s27, 3
      %p127 = por %p125, %p126
      %p128 = scmp.ne.s32.totalorder %s119, %s120
      %p129 = scmp.eq.s32.totalorder %s27, 0
      %p130 = por %p128, %p129
      %p131 = scmp.ne.s32.totalorder %s119, %s120
      %p132 = scmp.eq.s32.totalorder %s28, 3
      %p133 = por %p131, %p132
      %p135 = scmp.ne.s32.totalorder %s120, %s134
      %p136 = scmp.eq.s32.totalorder %s28, 0
      %p137 = por %p135, %p136
      %s139 = sadd.s32 %s138, 1
      %p142 = scmp.eq.s32.totalorder %s22, 3
      %p143 = scmp.ne.s32.totalorder %s138, %s140
      %p144 = scmp.eq.s32.totalorder %s22, 0
      %p145 = por %p143, %p144
      %p146 = scmp.ne.s32.totalorder %s138, %s140
      %p147 = scmp.eq.s32.totalorder %s27, 3
      %p148 = por %p146, %p147
      %p149 = scmp.ne.s32.totalorder %s140, %s141
      %p150 = scmp.eq.s32.totalorder %s27, 0
      %p151 = por %p149, %p150
      %p152 = scmp.ne.s32.totalorder %s140, %s141
      %p153 = scmp.eq.s32.totalorder %s28, 3
      %p154 = por %p152, %p153
      %p156 = scmp.ne.s32.totalorder %s141, %s155
      %p157 = scmp.eq.s32.totalorder %s28, 0
      %p158 = por %p156, %p157
      %s160 = sadd.s32 %s159, 1
      %p163 = scmp.eq.s32.totalorder %s22, 3
      %p164 = scmp.ne.s32.totalorder %s159, %s161
      %p165 = scmp.eq.s32.totalorder %s22, 0
      %p166 = por %p164, %p165
      %p167 = scmp.ne.s32.totalorder %s159, %s161
      %p168 = scmp.eq.s32.totalorder %s27, 3
      %p169 = por %p167, %p168
      %p170 = scmp.ne.s32.totalorder %s161, %s162
      %p171 = scmp.eq.s32.totalorder %s27, 0
      %p172 = por %p170, %p171
      %p173 = scmp.ne.s32.totalorder %s161, %s162
      %p174 = scmp.eq.s32.totalorder %s28, 3
      %p175 = por %p173, %p174
      %p177 = scmp.ne.s32.totalorder %s162, %s176
      %p178 = scmp.eq.s32.totalorder %s28, 0
      %p179 = por %p177, %p178
      %s181 = sadd.s32 %s180, 1
      %p184 = scmp.eq.s32.totalorder %s22, 3
      %p185 = scmp.ne.s32.totalorder %s180, %s182
      %p186 = scmp.eq.s32.totalorder %s22, 0
      %p187 = por %p185, %p186
      %p188 = scmp.ne.s32.totalorder %s180, %s182
      %p189 = scmp.eq.s32.totalorder %s27, 3
      %p190 = por %p188, %p189
      %p191 = scmp.ne.s32.totalorder %s182, %s183
      %p192 = scmp.eq.s32.totalorder %s27, 0
      %p193 = por %p191, %p192
      %p194 = scmp.ne.s32.totalorder %s182, %s183
      %p195 = scmp.eq.s32.totalorder %s28, 3
      %p196 = por %p194, %p195
      %p198 = scmp.ne.s32.totalorder %s183, %s197
      %p199 = scmp.eq.s32.totalorder %s28, 0
      %p200 = por %p198, %p199
      %s202 = sadd.s32 %s201, 1
      %p205 = scmp.eq.s32.totalorder %s22, 3
      %p206 = scmp.ne.s32.totalorder %s201, %s203
      %p207 = scmp.eq.s32.totalorder %s22, 0
      %p208 = por %p206, %p207
      %p209 = scmp.ne.s32.totalorder %s201, %s203
      %p210 = scmp.eq.s32.totalorder %s27, 3
      %p211 = por %p209, %p210
      %p212 = scmp.ne.s32.totalorder %s203, %s204
      %p213 = scmp.eq.s32.totalorder %s27, 0
      %p214 = por %p212, %p213
      %p215 = scmp.ne.s32.totalorder %s203, %s204
      %p216 = scmp.eq.s32.totalorder %s28, 3
      %p217 = por %p215, %p216
      %p219 = scmp.ne.s32.totalorder %s204, %s218
      %p220 = scmp.eq.s32.totalorder %s28, 0
      %p221 = por %p219, %p220
      %s222 = ssub.s32 %s29, %s41
      %p223 = scmp.eq.s32.totalorder %s222, 0
      %s225 = sadd.s32 %s224, 1
      %s226 = scalar_select %p223, %s224, %s225
      %p229 = pneg %p223
      %p230 = scmp.eq.s32.totalorder %s22, 3
      %p231 = por %p229, %p230
      %p232 = scmp.ne.s32.totalorder %s224, %s227
      %p233 = scmp.eq.s32.totalorder %s22, 0
      %p234 = por %p232, %p233
      %p235 = scmp.ne.s32.totalorder %s224, %s227
      %p236 = scmp.eq.s32.totalorder %s27, 3
      %p237 = por %p235, %p236
      %p238 = scmp.ne.s32.totalorder %s227, %s228
      %p239 = scmp.eq.s32.totalorder %s27, 0
      %p240 = por %p238, %p239
      %p241 = scmp.ne.s32.totalorder %s227, %s228
      %p242 = scmp.eq.s32.totalorder %s28, 3
      %p243 = por %p241, %p242
      %p245 = scmp.ne.s32.totalorder %s228, %s244
      %p246 = scmp.eq.s32.totalorder %s28, 0
      %p247 = por %p245, %p246
      %p248 = scmp.le.s32.totalorder 1, %s22
      %p249 = scmp.lt.s32.totalorder %s22, 5
      %p250 = pnand %p248, %p249
      %p251 = pneg %p250
      // Predicated region
      $region9: #{compression_rate_predictor.2} parent=5 // pred_check
        _
      $region10: #{compression_rate_predictor.2} parent=5 // pred_check_branch
        %253 = sbr.rel (%p250) target = $region12
      $region11: #{compression_rate_predictor.2} parent=5 // pred_region
        %s254 = ssub.s32 %s22, 1
        // Predicated region
        $region13: #{compression_rate_predictor.2} parent=11 // pred_check
          %p255 = pneg %p109
        $region14: #{compression_rate_predictor.2} parent=11 // pred_check_branch
          %257 = sbr.rel (%p255) target = $region16
        $region15: #{compression_rate_predictor.2} parent=11 // pred_region
          %259 = vsyncadd [#allocation9], 0
          %s260 = sshll.u32 %s1, 4
          %s261 = int_to_ptr.hbm [resolvable:$true] %s260
          %s262 = sshll.u32 [#allocation8], 4
          %s263 = int_to_ptr.vmem [resolvable:$true] %s262
          %268 = dma.hbm_to_vmem [thread:$0]  %s261, 1024, %s263, [#allocation9], 64, 64, 4
        $region16: #{compression_rate_predictor.2} parent=11 // pred_fallthru
          _
        // Predicated region
        $region17: #{compression_rate_predictor.2} parent=11 // pred_check
          %p269 = pneg %p130
        $region18: #{compression_rate_predictor.2} parent=11 // pred_check_branch
          %271 = sbr.rel (%p269) target = $region20
        $region19: #{compression_rate_predictor.2} parent=11 // pred_region
          %273 = vsyncadd [#allocation11], 0
          %s274 = sshll.u32 %s2, 4
          %s275 = int_to_ptr.hbm [resolvable:$true] %s274
          %s276 = sshll.u32 [#allocation10], 4
          %s277 = int_to_ptr.vmem [resolvable:$true] %s276
          %282 = dma.hbm_to_vmem [thread:$0]  %s275, 1024, %s277, [#allocation11], 64, 64, 4
        $region20: #{compression_rate_predictor.2} parent=11 // pred_fallthru
          _
        // Predicated region
        $region21: #{compression_rate_predictor.2} parent=11 // pred_check
          %p283 = pneg %p151
        $region22: #{compression_rate_predictor.2} parent=11 // pred_check_branch
          %285 = sbr.rel (%p283) target = $region24
        $region23: #{compression_rate_predictor.2} parent=11 // pred_region
          %287 = vsyncadd [#allocation11], 0
          %s288 = sshll.u32 %s3, 4
          %s289 = int_to_ptr.hbm [resolvable:$true] %s288
          %s290 = sshll.u32 [#allocation12], 4
          %s291 = int_to_ptr.vmem [resolvable:$true] %s290
          %296 = dma.hbm_to_vmem [thread:$0]  %s289, 1024, %s291, [#allocation11], 64, 64, 4
        $region24: #{compression_rate_predictor.2} parent=11 // pred_fallthru
          _
        // Predicated region
        $region25: #{compression_rate_predictor.2} parent=11 // pred_check
          %p297 = pneg %p172
        $region26: #{compression_rate_predictor.2} parent=11 // pred_check_branch
          %299 = sbr.rel (%p297) target = $region28
        $region27: #{compression_rate_predictor.2} parent=11 // pred_region
          _
        $region28: #{compression_rate_predictor.2} parent=11 // pred_fallthru
          _
        // Predicated region
        $region29: #{compression_rate_predictor.2} parent=11 // pred_check
          %p300 = pneg %p193
        $region30: #{compression_rate_predictor.2} parent=11 // pred_check_branch
          %302 = sbr.rel (%p300) target = $region32
        $region31: #{compression_rate_predictor.2} parent=11 // pred_region
          _
        $region32: #{compression_rate_predictor.2} parent=11 // pred_fallthru
          _
        // Predicated region
        $region33: #{compression_rate_predictor.2} parent=11 // pred_check
          %p303 = pneg %p214
        $region34: #{compression_rate_predictor.2} parent=11 // pred_check_branch
          %305 = sbr.rel (%p303) target = $region36
        $region35: #{compression_rate_predictor.2} parent=11 // pred_region
          _
        $region36: #{compression_rate_predictor.2} parent=11 // pred_fallthru
          _
      $region12: #{compression_rate_predictor.2} parent=5 // pred_fallthru
        _
      %p306 = scmp.lt.s32.totalorder %s22, 4
      // Predicated region
      $region37: #{compression_rate_predictor.2} parent=5 // pred_check
        %p307 = pneg %p306
      $region38: #{compression_rate_predictor.2} parent=5 // pred_check_branch
        %309 = sbr.rel (%p307) target = $region40
      $region39: #{compression_rate_predictor.2} parent=5 // pred_region
        // Predicated region
        $region41: #{compression_rate_predictor.2} parent=39 // pred_check
          %p310 = pneg %p56
        $region42: #{compression_rate_predictor.2} parent=39 // pred_check_branch
          %312 = sbr.rel (%p310) target = $region44
        $region43: #{compression_rate_predictor.2} parent=39 // pred_region
          %s313 = smul.u32 2, %s29
          %s314 = smul.u32 4, %s30
          %s315 = ssub.s32 1, %s313
          %p316 = scmp.gt.s32.totalorder %s315, 0
          %s317 = scalar_select %p316, %s315, 0
          %s318 = smul.u32 %s317, 4
          %p319 = scmp.lt.s32.totalorder %s313, 0
          %s320 = scalar_select %p319, %s313, 0
          %p321 = scmp.lt.s32.totalorder %s314, 7
          %s322 = scalar_select %p321, %s314, 7
          %s323 = smul.addr %s320, 8
          %s324 = sadd.s32 %s322, %s323
          %s325 = scalar_lea.vmem %s7, %s324
          %s326 = smul.u32 2, %s29
          %s327 = smul.u32 4, %s30
          %s328 = ssub.s32 1, %s326
          %p329 = scmp.gt.s32.totalorder %s328, 0
          %s330 = scalar_select %p329, %s328, 0
          %s331 = smul.u32 %s330, 4
        $region44: #{compression_rate_predictor.2} parent=39 // pred_fallthru
          _
        // Predicated region
        $region45: #{compression_rate_predictor.2} parent=39 // pred_check
          %p332 = pneg %p82
        $region46: #{compression_rate_predictor.2} parent=39 // pred_check_branch
          %334 = sbr.rel (%p332) target = $region48
        $region47: #{compression_rate_predictor.2} parent=39 // pred_region
          %s335 = smul.u32 64, %s30
          %p336 = scmp.lt.s32.totalorder %s335, 127
          %s337 = scalar_select %p336, %s335, 127
          %s338 = smul.addr %s337, 4
          %s339 = scalar_lea.vmem %s0, %s338
          %s340 = smul.u32 64, %s30
        $region48: #{compression_rate_predictor.2} parent=39 // pred_fallthru
          _
      $region40: #{compression_rate_predictor.2} parent=5 // pred_fallthru
        _
      %p341 = scmp.le.s32.totalorder 1, %s22
      %p342 = scmp.lt.s32.totalorder %s22, 5
      %p343 = pnand %p341, %p342
      %p344 = pneg %p343
      // Predicated region
      $region49: #{compression_rate_predictor.2} parent=5 // pred_check
        _
      $region50: #{compression_rate_predictor.2} parent=5 // pred_check_branch
        %346 = sbr.rel (%p343) target = $region52
      $region51: #{compression_rate_predictor.2} parent=5 // pred_region
        #allocation13 [shape = 'u8[16384]{0}', space=vmem, size = 0x4000, dematerialized = true, scoped, tag = 'FusionAdapter Buffer %fusion.1 = bf16[32,1024]{1,0:T(8,128)(2,1)} fusion(%param_7.1, %param_8), kind=kLoop, calls=%fused_computation.2.clone, metadata={op_name="jit(compression_rate_predictor)/jit(_pad)/pad" stack_frame_id=13}']
        %s347 = ssub.s32 %s22, 1
        // Predicated region
        $region53: #{compression_rate_predictor.2} parent=51 // pred_check
          %p348 = pneg %p109
        $region54: #{compression_rate_predictor.2} parent=51 // pred_check_branch
          %350 = sbr.rel (%p348) target = $region56
        $region55: #{compression_rate_predictor.2} parent=51 // pred_region
          %352 = dma.done [#allocation9], 1024
        $region56: #{compression_rate_predictor.2} parent=51 // pred_fallthru
          _
        // Predicated region
        $region57: #{compression_rate_predictor.2} parent=51 // pred_check
          %p353 = pneg %p130
        $region58: #{compression_rate_predictor.2} parent=51 // pred_check_branch
          %355 = sbr.rel (%p353) target = $region60
        $region59: #{compression_rate_predictor.2} parent=51 // pred_region
          %357 = dma.done [#allocation11], 1024
        $region60: #{compression_rate_predictor.2} parent=51 // pred_fallthru
          _
        // Predicated region
        $region61: #{compression_rate_predictor.2} parent=51 // pred_check
          %p358 = pneg %p151
        $region62: #{compression_rate_predictor.2} parent=51 // pred_check_branch
          %360 = sbr.rel (%p358) target = $region64
        $region63: #{compression_rate_predictor.2} parent=51 // pred_region
          %362 = dma.done [#allocation11], 1024
        $region64: #{compression_rate_predictor.2} parent=51 // pred_fallthru
          _
        %s363 = smul.u32 2, %s31
        %s364 = smul.u32 4, %s32
        %s365 = ssub.s32 1, %s363
        %p366 = scmp.gt.s32.totalorder %s365, 0
        %s367 = scalar_select %p366, %s365, 0
        %s368 = smul.u32 %s367, 4
        %p369 = scmp.lt.s32.totalorder %s363, 0
        %s370 = scalar_select %p369, %s363, 0
        %p371 = scmp.lt.s32.totalorder %s364, 7
        %s372 = scalar_select %p371, %s364, 7
        %s373 = smul.addr %s370, 8
        %s374 = sadd.s32 %s372, %s373
        %s375 = scalar_lea.vmem %s7, %s374
        %p376 = pneg %p62
        %p377 = pneg %p59
        %s378 = smul.u32 64, %s32
        %p379 = scmp.lt.s32.totalorder %s378, 127
        %s380 = scalar_select %p379, %s378, 127
        %s381 = smul.addr %s380, 4
        %s382 = scalar_lea.vmem %s0, %s381
        %p383 = pneg %p88
        %p384 = pneg %p85
        %p385 = pneg %p109
        %p386 = pneg %p106
        %p387 = pneg %p130
        %p388 = pneg %p127
        %p389 = pneg %p151
        %p390 = pneg %p148
        %p391 = pneg %p172
        %p392 = pneg %p169
        %p393 = pneg %p193
        %p394 = pneg %p190
        %p395 = pneg %p214
        %p396 = pneg %p211
        %p397 = pneg %p240
        %p398 = pneg %p237
        %s399 = smul.u32 2, %s31
        %p400 = scmp.lt.s32.totalorder %s399, 3
        %s401 = scalar_select %p400, %s399, 3
        %s402 = smul.addr %s401, 8
        %s403 = scalar_lea.vmem %s9, %s402
        %s404 = smul.u32 2, %s31
        %s405 = smul.u32 4, %s32
        %s406 = ssub.s32 1, %s404
        %p407 = scmp.gt.s32.totalorder %s406, 0
        %s408 = scalar_select %p407, %s406, 0
        %s409 = smul.u32 %s408, 4
        %p410 = scmp.lt.s32.totalorder %s404, 0
        %s411 = scalar_select %p410, %s404, 0
        %p412 = scmp.lt.s32.totalorder %s405, 7
        %s413 = scalar_select %p412, %s405, 7
        %s414 = smul.addr %s411, 8
        %s415 = sadd.s32 %s413, %s414
        %s416 = scalar_lea.vmem %s7, %s415
        %s417 = smul.u32 2, %s31
        %s418 = smul.u32 4, %s32
        %s419 = ssub.s32 1, %s417
        %p420 = scmp.gt.s32.totalorder %s419, 0
        %s421 = scalar_select %p420, %s419, 0
        %s422 = smul.u32 %s421, 4
        %s423 = smul.u32 64, %s32
        %p424 = scmp.lt.s32.totalorder %s423, 127
        %s425 = scalar_select %p424, %s423, 127
        %s426 = smul.addr %s425, 4
        %s427 = scalar_lea.vmem %s0, %s426
        %s428 = smul.u32 64, %s32
        %s429 = smul.u32 2, %s31
        %p430 = scmp.lt.s32.totalorder %s429, 3
        %s431 = scalar_select %p430, %s429, 3
        %s432 = smul.addr %s431, 8
        %s433 = scalar_lea.vmem %s9, %s432
        %s434 = smul.u32 2, %s31
        %s435 = ssub.s32 0, %s417
        %p436 = scmp.lt.s32.totalorder %s435, 0
        %s437 = scalar_select %p436, 0, 255
        %s438 = sand.u32 3, %s437
        %s439 = sshrl.u32 %s438, 1
        %s440 = sor.u32 %s438, %s439
        %s441 = sand.u32 %s440, 1
        %v442 = vld [vmem:[%s416] sm:%s441]
        %v443 = vunpack.c.l.bf16 %v442
        %v444 = vunpack.c.h.bf16 %v442
        %s445 = ssub.s32 0, %s417
        %v446 = vstv %s445
        %vm447 = vcmp.lt.s32.totalorder %v446, 0
        %v448 = vsel %vm447, %v15, %v443
        %s449 = smul.addr %s417, 8
        %v450 = vlaneseq
        %v451 = vshrl.u32 %v450, 7
        %v452 = vstv %s449
        %v453 = vadd.s32 %v451, %v452
        %vm454 = vcmp.lt.s32.totalorder %v453, 2
        %v455 = vsel %vm454, %v448, %v15
        %v456 = vpack.c.bf16 0.0, %v455
        %s458 = ssub.s32 16, 1
        %459 = vst [vmem:[#allocation13] sm:%s458] %v456
        %s460 = scalar_lea.vmem %s416, 1
        %s461 = ssub.s32 0, %s417
        %p462 = scmp.lt.s32.totalorder %s461, 0
        %s463 = scalar_select %p462, 0, 255
        %s464 = sand.u32 3, %s463
        %s465 = sshrl.u32 %s464, 1
        %s466 = sor.u32 %s464, %s465
        %s467 = sand.u32 %s466, 1
        %v468 = vld [vmem:[%s460] sm:%s467]
        %v469 = vunpack.c.l.bf16 %v468
        %v470 = vunpack.c.h.bf16 %v468
        %s471 = ssub.s32 0, %s417
        %v472 = vstv %s471
        %vm473 = vcmp.lt.s32.totalorder %v472, 0
        %v474 = vsel %vm473, %v15, %v469
        %s475 = smul.addr %s417, 8
        %v476 = vlaneseq
        %v477 = vshrl.u32 %v476, 7
        %v478 = vstv %s475
        %v479 = vadd.s32 %v477, %v478
        %vm480 = vcmp.lt.s32.totalorder %v479, 2
        %v481 = vsel %vm480, %v474, %v15
        %s482 = scalar_lea.vmem [#allocation13], 4
        %v483 = vpack.c.bf16 0.0, %v481
        %s485 = ssub.s32 16, 1
        %486 = vst [vmem:[%s482] sm:%s485] %v483
        %s487 = scalar_lea.vmem %s416, 2
        %s488 = ssub.s32 0, %s417
        %p489 = scmp.lt.s32.totalorder %s488, 0
        %s490 = scalar_select %p489, 0, 255
        %s491 = sand.u32 3, %s490
        %s492 = sshrl.u32 %s491, 1
        %s493 = sor.u32 %s491, %s492
        %s494 = sand.u32 %s493, 1
        %v495 = vld [vmem:[%s487] sm:%s494]
        %v496 = vunpack.c.l.bf16 %v495
        %v497 = vunpack.c.h.bf16 %v495
        %s498 = ssub.s32 0, %s417
        %v499 = vstv %s498
        %vm500 = vcmp.lt.s32.totalorder %v499, 0
        %v501 = vsel %vm500, %v15, %v496
        %s502 = smul.addr %s417, 8
        %v503 = vlaneseq
        %v504 = vshrl.u32 %v503, 7
        %v505 = vstv %s502
        %v506 = vadd.s32 %v504, %v505
        %vm507 = vcmp.lt.s32.totalorder %v506, 2
        %v508 = vsel %vm507, %v501, %v15
        %s509 = scalar_lea.vmem [#allocation13], 8
        %v510 = vpack.c.bf16 0.0, %v508
        %s512 = ssub.s32 16, 1
        %513 = vst [vmem:[%s509] sm:%s512] %v510
        %s514 = scalar_lea.vmem %s416, 3
        %s515 = ssub.s32 0, %s417
        %p516 = scmp.lt.s32.totalorder %s515, 0
        %s517 = scalar_select %p516, 0, 255
        %s518 = sand.u32 3, %s517
        %s519 = sshrl.u32 %s518, 1
        %s520 = sor.u32 %s518, %s519
        %s521 = sand.u32 %s520, 1
        %v522 = vld [vmem:[%s514] sm:%s521]
        %v523 = vunpack.c.l.bf16 %v522
        %v524 = vunpack.c.h.bf16 %v522
        %s525 = ssub.s32 0, %s417
        %v526 = vstv %s525
        %vm527 = vcmp.lt.s32.totalorder %v526, 0
        %v528 = vsel %vm527, %v15, %v523
        %s529 = smul.addr %s417, 8
        %v530 = vlaneseq
        %v531 = vshrl.u32 %v530, 7
        %v532 = vstv %s529
        %v533 = vadd.s32 %v531, %v532
        %vm534 = vcmp.lt.s32.totalorder %v533, 2
        %v535 = vsel %vm534, %v528, %v15
        %s536 = scalar_lea.vmem [#allocation13], 12
        %v537 = vpack.c.bf16 0.0, %v535
        %s539 = ssub.s32 16, 1
        %540 = vst [vmem:[%s536] sm:%s539] %v537
        %s541 = scalar_lea.vmem [#allocation13], 16
        %v542 = vpack.c.bf16 0.0, %v15
        %s544 = ssub.s32 16, 1
        %545 = vst [vmem:[%s541] sm:%s544] %v542
        %s546 = scalar_lea.vmem [#allocation13], 20
        %v547 = vpack.c.bf16 0.0, %v15
        %s549 = ssub.s32 16, 1
        %550 = vst [vmem:[%s546] sm:%s549] %v547
        %s551 = scalar_lea.vmem [#allocation13], 24
        %v552 = vpack.c.bf16 0.0, %v15
        %s554 = ssub.s32 16, 1
        %555 = vst [vmem:[%s551] sm:%s554] %v552
        %s556 = scalar_lea.vmem [#allocation13], 28
        %v557 = vpack.c.bf16 0.0, %v15
        %s559 = ssub.s32 16, 1
        %560 = vst [vmem:[%s556] sm:%s559] %v557
        %p561 = scmp.eq.s32.totalorder %s32, 0
        // Predicated region
        $region65: #{compression_rate_predictor.2} parent=51 // pred_check
          %p562 = pneg %p561
        $region66: #{compression_rate_predictor.2} parent=51 // pred_check_branch
          %564 = sbr.rel (%p562) target = $region68
        $region67: #{compression_rate_predictor.2} parent=51 // pred_region
          %565 = vst [vmem:[#allocation2] sm:$0xff] 0.0
          %566 = vst [vmem:[#allocation2 + $0x8] sm:$0xff] 0.0
        $region68: #{compression_rate_predictor.2} parent=51 // pred_fallthru
          _
        %v567 = vld [vmem:[#allocation2] sm:$0xff]
        %v568 = vld [vmem:[#allocation2 + $0x8] sm:$0xff]
        %v569 = vld [vmem:[#allocation13] sm:$0xff]
        %v570 = vld [vmem:[#allocation13 + $0x8] sm:$0xff]
        %v571 = vld [vmem:[#allocation13 + $0x10] sm:$0xff]
        %v572 = vld [vmem:[#allocation13 + $0x18] sm:$0xff]
        %v573 = vld [vmem:[%s427] sm:$0xf]
        %v574 = vld [vmem:[%s427 + $0x4] sm:$0xf]
        %v575 = vld [vmem:[%s427 + $0x8] sm:$0xf]
        %v576 = vld [vmem:[%s427 + $0xc] sm:$0xf]
        %v577 = vld [vmem:[%s427 + $0x10] sm:$0xf]
        %v578 = vld [vmem:[%s427 + $0x14] sm:$0xf]
        %v579 = vld [vmem:[%s427 + $0x18] sm:$0xf]
        %v580 = vld [vmem:[%s427 + $0x1c] sm:$0xf]
        %v581 = vld [vmem:[%s427 + $0x20] sm:$0xf]
        %v582 = vld [vmem:[%s427 + $0x24] sm:$0xf]
        %v583 = vld [vmem:[%s427 + $0x28] sm:$0xf]
        %v584 = vld [vmem:[%s427 + $0x2c] sm:$0xf]
        %v585 = vld [vmem:[%s427 + $0x30] sm:$0xf]
        %v586 = vld [vmem:[%s427 + $0x34] sm:$0xf]
        %v587 = vld [vmem:[%s427 + $0x38] sm:$0xf]
        %v588 = vld [vmem:[%s427 + $0x3c] sm:$0xf]
        %v589 = vld [vmem:[%s427 + $0x40] sm:$0xf]
        %v590 = vld [vmem:[%s427 + $0x44] sm:$0xf]
        %v591 = vld [vmem:[%s427 + $0x48] sm:$0xf]
        %v592 = vld [vmem:[%s427 + $0x4c] sm:$0xf]
        %v593 = vld [vmem:[%s427 + $0x50] sm:$0xf]
        %v594 = vld [vmem:[%s427 + $0x54] sm:$0xf]
        %v595 = vld [vmem:[%s427 + $0x58] sm:$0xf]
        %v596 = vld [vmem:[%s427 + $0x5c] sm:$0xf]
        %v597 = vld [vmem:[%s427 + $0x60] sm:$0xf]
        %v598 = vld [vmem:[%s427 + $0x64] sm:$0xf]
        %v599 = vld [vmem:[%s427 + $0x68] sm:$0xf]
        %v600 = vld [vmem:[%s427 + $0x6c] sm:$0xf]
        %v601 = vld [vmem:[%s427 + $0x70] sm:$0xf]
        %v602 = vld [vmem:[%s427 + $0x74] sm:$0xf]
        %v603 = vld [vmem:[%s427 + $0x78] sm:$0xf]
        %v604 = vld [vmem:[%s427 + $0x7c] sm:$0xf]
        %v605 = vld [vmem:[%s427 + $0x80] sm:$0xf]
        %v606 = vld [vmem:[%s427 + $0x84] sm:$0xf]
        %v607 = vld [vmem:[%s427 + $0x88] sm:$0xf]
        %v608 = vld [vmem:[%s427 + $0x8c] sm:$0xf]
        %v609 = vld [vmem:[%s427 + $0x90] sm:$0xf]
        %v610 = vld [vmem:[%s427 + $0x94] sm:$0xf]
        %v611 = vld [vmem:[%s427 + $0x98] sm:$0xf]
        %v612 = vld [vmem:[%s427 + $0x9c] sm:$0xf]
        %v613 = vld [vmem:[%s427 + $0xa0] sm:$0xf]
        %v614 = vld [vmem:[%s427 + $0xa4] sm:$0xf]
        %v615 = vld [vmem:[%s427 + $0xa8] sm:$0xf]
        %v616 = vld [vmem:[%s427 + $0xac] sm:$0xf]
        %v617 = vld [vmem:[%s427 + $0xb0] sm:$0xf]
        %v618 = vld [vmem:[%s427 + $0xb4] sm:$0xf]
        %v619 = vld [vmem:[%s427 + $0xb8] sm:$0xf]
        %v620 = vld [vmem:[%s427 + $0xbc] sm:$0xf]
        %v621 = vld [vmem:[%s427 + $0xc0] sm:$0xf]
        %v622 = vld [vmem:[%s427 + $0xc4] sm:$0xf]
        %v623 = vld [vmem:[%s427 + $0xc8] sm:$0xf]
        %v624 = vld [vmem:[%s427 + $0xcc] sm:$0xf]
        %v625 = vld [vmem:[%s427 + $0xd0] sm:$0xf]
        %v626 = vld [vmem:[%s427 + $0xd4] sm:$0xf]
        %v627 = vld [vmem:[%s427 + $0xd8] sm:$0xf]
        %v628 = vld [vmem:[%s427 + $0xdc] sm:$0xf]
        %v629 = vld [vmem:[%s427 + $0xe0] sm:$0xf]
        %v630 = vld [vmem:[%s427 + $0xe4] sm:$0xf]
        %v631 = vld [vmem:[%s427 + $0xe8] sm:$0xf]
        %v632 = vld [vmem:[%s427 + $0xec] sm:$0xf]
        %v633 = vld [vmem:[%s427 + $0xf0] sm:$0xf]
        %v634 = vld [vmem:[%s427 + $0xf4] sm:$0xf]
        %v635 = vld [vmem:[%s427 + $0xf8] sm:$0xf]
        %v636 = vld [vmem:[%s427 + $0xfc] sm:$0xf]
        %v641 = vunpack.c.l.b16 %v569
        %v642 = vunpack.c.h.b16 %v569
        %v643 = vunpack.c.l.b16 %v570
        %v644 = vunpack.c.h.b16 %v570
        %v645 = vunpack.c.l.b16 %v571
        %v646 = vunpack.c.h.b16 %v571
        %v647 = vunpack.c.l.b16 %v572
        %v648 = vunpack.c.h.b16 %v572
        %v649 = vpack.c.b16 %v645, %v641
        %v650 = vpack.c.b16 %v646, %v642
        %v651 = vpack.c.b16 %v647, %v643
        %v652 = vpack.c.b16 %v648, %v644
        %v721 = vunpack.c.l.b16 %v573
        %v722 = vunpack.c.l.b16 %v574
        %v723 = vunpack.c.l.b16 %v575
        %v724 = vunpack.c.l.b16 %v576
        %v725 = vunpack.c.l.b16 %v577
        %v726 = vunpack.c.l.b16 %v578
        %v727 = vunpack.c.l.b16 %v579
        %v728 = vunpack.c.l.b16 %v580
        %v729 = vunpack.c.l.b16 %v581
        %v730 = vunpack.c.l.b16 %v582
        %v731 = vunpack.c.l.b16 %v583
        %v732 = vunpack.c.l.b16 %v584
        %v733 = vunpack.c.l.b16 %v585
        %v734 = vunpack.c.l.b16 %v586
        %v735 = vunpack.c.l.b16 %v587
        %v736 = vunpack.c.l.b16 %v588
        %v737 = vunpack.c.l.b16 %v589
        %v738 = vunpack.c.l.b16 %v590
        %v739 = vunpack.c.l.b16 %v591
        %v740 = vunpack.c.l.b16 %v592
        %v741 = vunpack.c.l.b16 %v593
        %v742 = vunpack.c.l.b16 %v594
        %v743 = vunpack.c.l.b16 %v595
        %v744 = vunpack.c.l.b16 %v596
        %v745 = vunpack.c.l.b16 %v597
        %v746 = vunpack.c.l.b16 %v598
        %v747 = vunpack.c.l.b16 %v599
        %v748 = vunpack.c.l.b16 %v600
        %v749 = vunpack.c.l.b16 %v601
        %v750 = vunpack.c.l.b16 %v602
        %v751 = vunpack.c.l.b16 %v603
        %v752 = vunpack.c.l.b16 %v604
        %v753 = vunpack.c.l.b16 %v605
        %v754 = vunpack.c.l.b16 %v606
        %v755 = vunpack.c.l.b16 %v607
        %v756 = vunpack.c.l.b16 %v608
        %v757 = vunpack.c.l.b16 %v609
        %v758 = vunpack.c.l.b16 %v610
        %v759 = vunpack.c.l.b16 %v611
        %v760 = vunpack.c.l.b16 %v612
        %v761 = vunpack.c.l.b16 %v613
        %v762 = vunpack.c.l.b16 %v614
        %v763 = vunpack.c.l.b16 %v615
        %v764 = vunpack.c.l.b16 %v616
        %v765 = vunpack.c.l.b16 %v617
        %v766 = vunpack.c.l.b16 %v618
        %v767 = vunpack.c.l.b16 %v619
        %v768 = vunpack.c.l.b16 %v620
        %v769 = vunpack.c.l.b16 %v621
        %v770 = vunpack.c.l.b16 %v622
        %v771 = vunpack.c.l.b16 %v623
        %v772 = vunpack.c.l.b16 %v624
        %v773 = vunpack.c.l.b16 %v625
        %v774 = vunpack.c.l.b16 %v626
        %v775 = vunpack.c.l.b16 %v627
        %v776 = vunpack.c.l.b16 %v628
        %v777 = vunpack.c.l.b16 %v629
        %v778 = vunpack.c.l.b16 %v630
        %v779 = vunpack.c.l.b16 %v631
        %v780 = vunpack.c.l.b16 %v632
        %v781 = vunpack.c.l.b16 %v633
        %v782 = vunpack.c.l.b16 %v634
        %v783 = vunpack.c.l.b16 %v635
        %v784 = vunpack.c.l.b16 %v636
        %v785 = vpack.c.b16 %v722, %v721
        %v786 = vpack.c.b16 %v724, %v723
        %v787 = vpack.c.b16 %v726, %v725
        %v788 = vpack.c.b16 %v728, %v727
        %v789 = vpack.c.b16 %v730, %v729
        %v790 = vpack.c.b16 %v732, %v731
        %v791 = vpack.c.b16 %v734, %v733
        %v792 = vpack.c.b16 %v736, %v735
        %v793 = vpack.c.b16 %v738, %v737
        %v794 = vpack.c.b16 %v740, %v739
        %v795 = vpack.c.b16 %v742, %v741
        %v796 = vpack.c.b16 %v744, %v743
        %v797 = vpack.c.b16 %v746, %v745
        %v798 = vpack.c.b16 %v748, %v747
        %v799 = vpack.c.b16 %v750, %v749
        %v800 = vpack.c.b16 %v752, %v751
        %v801 = vpack.c.b16 %v754, %v753
        %v802 = vpack.c.b16 %v756, %v755
        %v803 = vpack.c.b16 %v758, %v757
        %v804 = vpack.c.b16 %v760, %v759
        %v805 = vpack.c.b16 %v762, %v761
        %v806 = vpack.c.b16 %v764, %v763
        %v807 = vpack.c.b16 %v766, %v765
        %v808 = vpack.c.b16 %v768, %v767
        %v809 = vpack.c.b16 %v770, %v769
        %v810 = vpack.c.b16 %v772, %v771
        %v811 = vpack.c.b16 %v774, %v773
        %v812 = vpack.c.b16 %v776, %v775
        %v813 = vpack.c.b16 %v778, %v777
        %v814 = vpack.c.b16 %v780, %v779
        %v815 = vpack.c.b16 %v782, %v781
        %v816 = vpack.c.b16 %v784, %v783
        %849 = vmatpush.bf16.msra.mxu0 %v792
        %850 = vmatpush.bf16.msra.mxu0 %v791
        %851 = vmatpush.bf16.msra.mxu0 %v790
        %852 = vmatpush.bf16.msra.mxu0 %v789
        %853 = vmatpush.bf16.msra.mxu0 %v788
        %854 = vmatpush.bf16.msra.mxu0 %v787
        %855 = vmatpush.bf16.msra.mxu0 %v786
        %856 = vmatpush.bf16.msra.mxu0 %v785
        %857 = vmatmul.bf16.gmra.mxu0 %v649
        %v858 = vpop.f32.mrf.mxu0
        %v859 = vadd.f32 0.0, %v858
        %v860 = vpop.f32.mrf.mxu0
        %v861 = vadd.f32 0.0, %v860
        %862 = vdwg.mxu0
        %863 = vmatpush.bf16.msra.mxu0 %v800
        %864 = vmatpush.bf16.msra.mxu0 %v799
        %865 = vmatpush.bf16.msra.mxu0 %v798
        %866 = vmatpush.bf16.msra.mxu0 %v797
        %867 = vmatpush.bf16.msra.mxu0 %v796
        %868 = vmatpush.bf16.msra.mxu0 %v795
        %869 = vmatpush.bf16.msra.mxu0 %v794
        %870 = vmatpush.bf16.msra.mxu0 %v793
        %871 = vmatmul.bf16.gmra.mxu0 %v650
        %v872 = vpop.f32.mrf.mxu0
        %v873 = vadd.f32 %v859, %v872
        %v874 = vpop.f32.mrf.mxu0
        %v875 = vadd.f32 %v861, %v874
        %876 = vdwg.mxu0
        %877 = vmatpush.bf16.msra.mxu0 %v808
        %878 = vmatpush.bf16.msra.mxu0 %v807
        %879 = vmatpush.bf16.msra.mxu0 %v806
        %880 = vmatpush.bf16.msra.mxu0 %v805
        %881 = vmatpush.bf16.msra.mxu0 %v804
        %882 = vmatpush.bf16.msra.mxu0 %v803
        %883 = vmatpush.bf16.msra.mxu0 %v802
        %884 = vmatpush.bf16.msra.mxu0 %v801
        %885 = vmatmul.bf16.gmra.mxu0 %v651
        %v886 = vpop.f32.mrf.mxu0
        %v887 = vadd.f32 %v873, %v886
        %v888 = vpop.f32.mrf.mxu0
        %v889 = vadd.f32 %v875, %v888
        %890 = vdwg.mxu0
        %891 = vmatpush.bf16.msra.mxu0 %v816
        %892 = vmatpush.bf16.msra.mxu0 %v815
        %893 = vmatpush.bf16.msra.mxu0 %v814
        %894 = vmatpush.bf16.msra.mxu0 %v813
        %895 = vmatpush.bf16.msra.mxu0 %v812
        %896 = vmatpush.bf16.msra.mxu0 %v811
        %897 = vmatpush.bf16.msra.mxu0 %v810
        %898 = vmatpush.bf16.msra.mxu0 %v809
        %899 = vmatmul.bf16.gmra.mxu0 %v652
        %v900 = vpop.f32.mrf.mxu0
        %v901 = vadd.f32 %v887, %v900
        %v902 = vpop.f32.mrf.mxu0
        %v903 = vadd.f32 %v889, %v902
        %904 = vdwg.mxu0
        %v905 = vadd.f32 %v567, %v901
        %v906 = vadd.f32 %v568, %v903
        %907 = vst [vmem:[#allocation2] sm:$0xff] %v905
        %908 = vst [vmem:[#allocation2 + $0x8] sm:$0xff] %v906
        %p909 = scmp.eq.s32.totalorder %s32, 1
        // Predicated region
        $region69: #{compression_rate_predictor.2} parent=51 // pred_check
          %p910 = pneg %p909
        $region70: #{compression_rate_predictor.2} parent=51 // pred_check_branch
          %912 = sbr.rel (%p910) target = $region72
        $region71: #{compression_rate_predictor.2} parent=51 // pred_region
          %v913 = vld [vmem:[#allocation2] sm:$0xff]
          %v914 = vld [vmem:[#allocation2 + $0x8] sm:$0xff]
          %v915 = vpack.c.bf16 %v914, %v913
          %v916 = vld [vmem:[#allocation8] sm:$0xf]
          %v917 = vld [vmem:[#allocation8 + $0x4] sm:$0xf]
          %v918 = vld [vmem:[#allocation8 + $0x8] sm:$0xf]
          %v919 = vld [vmem:[#allocation8 + $0xc] sm:$0xf]
          %v920 = vld [vmem:[#allocation8 + $0x10] sm:$0xf]
          %v921 = vld [vmem:[#allocation8 + $0x14] sm:$0xf]
          %v922 = vld [vmem:[#allocation8 + $0x18] sm:$0xf]
          %v923 = vld [vmem:[#allocation8 + $0x1c] sm:$0xf]
          %v924 = vld [vmem:[#allocation8 + $0x20] sm:$0xf]
          %v925 = vld [vmem:[#allocation8 + $0x24] sm:$0xf]
          %v926 = vld [vmem:[#allocation8 + $0x28] sm:$0xf]
          %v927 = vld [vmem:[#allocation8 + $0x2c] sm:$0xf]
          %v928 = vld [vmem:[#allocation8 + $0x30] sm:$0xf]
          %v929 = vld [vmem:[#allocation8 + $0x34] sm:$0xf]
          %v930 = vld [vmem:[#allocation8 + $0x38] sm:$0xf]
          %v931 = vld [vmem:[#allocation8 + $0x3c] sm:$0xf]
          %v932 = vld [vmem:[%s4] sm:$0x1]
          %v934 = vperm.slane %v932, 0
          %v952 = vunpack.c.l.b16 %v916
          %v953 = vunpack.c.l.b16 %v917
          %v954 = vunpack.c.l.b16 %v918
          %v955 = vunpack.c.l.b16 %v919
          %v956 = vunpack.c.l.b16 %v920
          %v957 = vunpack.c.l.b16 %v921
          %v958 = vunpack.c.l.b16 %v922
          %v959 = vunpack.c.l.b16 %v923
          %v960 = vunpack.c.l.b16 %v924
          %v961 = vunpack.c.l.b16 %v925
          %v962 = vunpack.c.l.b16 %v926
          %v963 = vunpack.c.l.b16 %v927
          %v964 = vunpack.c.l.b16 %v928
          %v965 = vunpack.c.l.b16 %v929
          %v966 = vunpack.c.l.b16 %v930
          %v967 = vunpack.c.l.b16 %v931
          %v968 = vpack.c.b16 %v953, %v952
          %v969 = vpack.c.b16 %v955, %v954
          %v970 = vpack.c.b16 %v957, %v956
          %v971 = vpack.c.b16 %v959, %v958
          %v972 = vpack.c.b16 %v961, %v960
          %v973 = vpack.c.b16 %v963, %v962
          %v974 = vpack.c.b16 %v965, %v964
          %v975 = vpack.c.b16 %v967, %v966
          %984 = vmatpush.bf16.msra.mxu0 %v975
          %985 = vmatpush.bf16.msra.mxu0 %v974
          %986 = vmatpush.bf16.msra.mxu0 %v973
          %987 = vmatpush.bf16.msra.mxu0 %v972
          %988 = vmatpush.bf16.msra.mxu0 %v971
          %989 = vmatpush.bf16.msra.mxu0 %v970
          %990 = vmatpush.bf16.msra.mxu0 %v969
          %991 = vmatpush.bf16.msra.mxu0 %v968
          %992 = vmatmul.bf16.gmra.mxu0 %v915
          %v993 = vpop.f32.mrf.mxu0
          %v994 = vadd.f32 %v934, %v993
          %v995 = vpop.f32.mrf.mxu0
          %v996 = vadd.f32 %v934, %v995
          %997 = vdwg.mxu0
          %v998 = vmax.f32 %v994, 0.0
          %v999 = vmax.f32 %v996, 0.0
          %v1000 = vpack.c.bf16 %v999, %v998
          %v1001 = vld [vmem:[#allocation10] sm:$0xf]
          %v1002 = vld [vmem:[#allocation10 + $0x4] sm:$0xf]
          %v1003 = vld [vmem:[#allocation10 + $0x8] sm:$0xf]
          %v1004 = vld [vmem:[#allocation10 + $0xc] sm:$0xf]
          %v1005 = vld [vmem:[#allocation10 + $0x10] sm:$0xf]
          %v1006 = vld [vmem:[#allocation10 + $0x14] sm:$0xf]
          %v1007 = vld [vmem:[#allocation10 + $0x18] sm:$0xf]
          %v1008 = vld [vmem:[#allocation10 + $0x1c] sm:$0xf]
          %v1009 = vld [vmem:[#allocation10 + $0x20] sm:$0xf]
          %v1010 = vld [vmem:[#allocation10 + $0x24] sm:$0xf]
          %v1011 = vld [vmem:[#allocation10 + $0x28] sm:$0xf]
          %v1012 = vld [vmem:[#allocation10 + $0x2c] sm:$0xf]
          %v1013 = vld [vmem:[#allocation10 + $0x30] sm:$0xf]
          %v1014 = vld [vmem:[#allocation10 + $0x34] sm:$0xf]
          %v1015 = vld [vmem:[#allocation10 + $0x38] sm:$0xf]
          %v1016 = vld [vmem:[#allocation10 + $0x3c] sm:$0xf]
          %v1017 = vld [vmem:[%s5] sm:$0x1]
          %v1019 = vperm.slane %v1017, 0
          %v1037 = vunpack.c.l.b16 %v1001
          %v1038 = vunpack.c.l.b16 %v1002
          %v1039 = vunpack.c.l.b16 %v1003
          %v1040 = vunpack.c.l.b16 %v1004
          %v1041 = vunpack.c.l.b16 %v1005
          %v1042 = vunpack.c.l.b16 %v1006
          %v1043 = vunpack.c.l.b16 %v1007
          %v1044 = vunpack.c.l.b16 %v1008
          %v1045 = vunpack.c.l.b16 %v1009
          %v1046 = vunpack.c.l.b16 %v1010
          %v1047 = vunpack.c.l.b16 %v1011
          %v1048 = vunpack.c.l.b16 %v1012
          %v1049 = vunpack.c.l.b16 %v1013
          %v1050 = vunpack.c.l.b16 %v1014
          %v1051 = vunpack.c.l.b16 %v1015
          %v1052 = vunpack.c.l.b16 %v1016
          %v1053 = vpack.c.b16 %v1038, %v1037
          %v1054 = vpack.c.b16 %v1040, %v1039
          %v1055 = vpack.c.b16 %v1042, %v1041
          %v1056 = vpack.c.b16 %v1044, %v1043
          %v1057 = vpack.c.b16 %v1046, %v1045
          %v1058 = vpack.c.b16 %v1048, %v1047
          %v1059 = vpack.c.b16 %v1050, %v1049
          %v1060 = vpack.c.b16 %v1052, %v1051
          %1069 = vmatpush.bf16.msra.mxu0 %v1060
          %1070 = vmatpush.bf16.msra.mxu0 %v1059
          %1071 = vmatpush.bf16.msra.mxu0 %v1058
          %1072 = vmatpush.bf16.msra.mxu0 %v1057
          %1073 = vmatpush.bf16.msra.mxu0 %v1056
          %1074 = vmatpush.bf16.msra.mxu0 %v1055
          %1075 = vmatpush.bf16.msra.mxu0 %v1054
          %1076 = vmatpush.bf16.msra.mxu0 %v1053
          %1077 = vmatmul.bf16.gmra.mxu0 %v1000
          %v1078 = vpop.f32.mrf.mxu0
          %v1079 = vadd.f32 %v1019, %v1078
          %v1080 = vpop.f32.mrf.mxu0
          %v1081 = vadd.f32 %v1019, %v1080
          %1082 = vdwg.mxu0
          %v1083 = vmax.f32 %v1079, 0.0
          %v1084 = vmax.f32 %v1081, 0.0
          %v1085 = vpack.c.bf16 %v1084, %v1083
          %v1086 = vld [vmem:[#allocation12] sm:$0xf]
          %v1087 = vld [vmem:[#allocation12 + $0x4] sm:$0xf]
          %v1088 = vld [vmem:[#allocation12 + $0x8] sm:$0xf]
          %v1089 = vld [vmem:[#allocation12 + $0xc] sm:$0xf]
          %v1090 = vld [vmem:[#allocation12 + $0x10] sm:$0xf]
          %v1091 = vld [vmem:[#allocation12 + $0x14] sm:$0xf]
          %v1092 = vld [vmem:[#allocation12 + $0x18] sm:$0xf]
          %v1093 = vld [vmem:[#allocation12 + $0x1c] sm:$0xf]
          %v1094 = vld [vmem:[#allocation12 + $0x20] sm:$0xf]
          %v1095 = vld [vmem:[#allocation12 + $0x24] sm:$0xf]
          %v1096 = vld [vmem:[#allocation12 + $0x28] sm:$0xf]
          %v1097 = vld [vmem:[#allocation12 + $0x2c] sm:$0xf]
          %v1098 = vld [vmem:[#allocation12 + $0x30] sm:$0xf]
          %v1099 = vld [vmem:[#allocation12 + $0x34] sm:$0xf]
          %v1100 = vld [vmem:[#allocation12 + $0x38] sm:$0xf]
          %v1101 = vld [vmem:[#allocation12 + $0x3c] sm:$0xf]
          %v1102 = vld [vmem:[%s6] sm:$0x1]
          %v1104 = vperm.slane %v1102, 0
          %v1122 = vunpack.c.l.b16 %v1086
          %v1123 = vunpack.c.l.b16 %v1087
          %v1124 = vunpack.c.l.b16 %v1088
          %v1125 = vunpack.c.l.b16 %v1089
          %v1126 = vunpack.c.l.b16 %v1090
          %v1127 = vunpack.c.l.b16 %v1091
          %v1128 = vunpack.c.l.b16 %v1092
          %v1129 = vunpack.c.l.b16 %v1093
          %v1130 = vunpack.c.l.b16 %v1094
          %v1131 = vunpack.c.l.b16 %v1095
          %v1132 = vunpack.c.l.b16 %v1096
          %v1133 = vunpack.c.l.b16 %v1097
          %v1134 = vunpack.c.l.b16 %v1098
          %v1135 = vunpack.c.l.b16 %v1099
          %v1136 = vunpack.c.l.b16 %v1100
          %v1137 = vunpack.c.l.b16 %v1101
          %v1138 = vpack.c.b16 %v1123, %v1122
          %v1139 = vpack.c.b16 %v1125, %v1124
          %v1140 = vpack.c.b16 %v1127, %v1126
          %v1141 = vpack.c.b16 %v1129, %v1128
          %v1142 = vpack.c.b16 %v1131, %v1130
          %v1143 = vpack.c.b16 %v1133, %v1132
          %v1144 = vpack.c.b16 %v1135, %v1134
          %v1145 = vpack.c.b16 %v1137, %v1136
          %1154 = vmatpush.bf16.msra.mxu0 %v1145
          %1155 = vmatpush.bf16.msra.mxu0 %v1144
          %1156 = vmatpush.bf16.msra.mxu0 %v1143
          %1157 = vmatpush.bf16.msra.mxu0 %v1142
          %1158 = vmatpush.bf16.msra.mxu0 %v1141
          %1159 = vmatpush.bf16.msra.mxu0 %v1140
          %1160 = vmatpush.bf16.msra.mxu0 %v1139
          %1161 = vmatpush.bf16.msra.mxu0 %v1138
          %1162 = vmatmul.bf16.gmra.mxu0 %v1085
          %v1163 = vpop.f32.mrf.mxu0
          %v1164 = vadd.f32 %v1104, %v1163
          %v1165 = vpop.f32.mrf.mxu0
          %v1166 = vadd.f32 %v1104, %v1165
          %1167 = vdwg.mxu0
          %1168 = vst [vmem:[%s433] sm:$0xff] %v1164
          %1169 = vst [vmem:[%s433 + $0x8] sm:$0xff] %v1166
        $region72: #{compression_rate_predictor.2} parent=51 // pred_fallthru
          _
        %s1170 = smul.u32 2, %s31
        %p1171 = scmp.lt.s32.totalorder %s1170, 3
        %s1172 = scalar_select %p1171, %s1170, 3
        %s1173 = smul.addr %s1172, 8
        %s1174 = scalar_lea.vmem %s9, %s1173
        // Predicated region
        $region73: #{compression_rate_predictor.2} parent=51 // pred_check
          %p1175 = pneg %p237
        $region74: #{compression_rate_predictor.2} parent=51 // pred_check_branch
          %1177 = sbr.rel (%p1175) target = $region76
        $region75: #{compression_rate_predictor.2} parent=51 // pred_region
          %s1178 = smul.u32 2, %s31
        $region76: #{compression_rate_predictor.2} parent=51 // pred_fallthru
          _
      $region52: #{compression_rate_predictor.2} parent=5 // pred_fallthru
        _
      %p1179 = scmp.le.s32.totalorder 2, %s22
      // Predicated region
      $region77: #{compression_rate_predictor.2} parent=5 // pred_check
        %p1180 = pneg %p1179
      $region78: #{compression_rate_predictor.2} parent=5 // pred_check_branch
        %1182 = sbr.rel (%p1180) target = $region80
      $region79: #{compression_rate_predictor.2} parent=5 // pred_region
        %s1183 = ssub.s32 %s22, 2
        // Predicated region
        $region81: #{compression_rate_predictor.2} parent=79 // pred_check
          %p1184 = pneg %p243
        $region82: #{compression_rate_predictor.2} parent=79 // pred_check_branch
          %1186 = sbr.rel (%p1184) target = $region84
        $region83: #{compression_rate_predictor.2} parent=79 // pred_region
          %s1187 = smul.u32 2, %s33
          %p1188 = scmp.lt.s32.totalorder %s1187, 3
          %s1189 = scalar_select %p1188, %s1187, 3
          %s1190 = smul.addr %s1189, 8
          %s1191 = scalar_lea.vmem %s9, %s1190
        $region84: #{compression_rate_predictor.2} parent=79 // pred_fallthru
          _
      $region80: #{compression_rate_predictor.2} parent=5 // pred_fallthru
        _
    $region6: #{compression_rate_predictor.2} parent=1 // loop_footer
      %s26 = sadd.s32 1, %s22
    $region7: #{compression_rate_predictor.2} parent=1 // loop_footer_branch
      %21 = sbr.rel target = $region3
    $region8: #{compression_rate_predictor.2} parent=1 // loop_exit
      _
    %1192 = vsyncpa [#allocation9], 1
    %s1193 = scalar_lea.sflag [#allocation9], 1
    %1194 = vsyncpa %s1193, 1
    %1195 = vsyncpa [#allocation11], 1

</llo_original>
